<compile_context>
chip_gen: v6e
topology: v6e:2x2x1
jax: 0.10.0
libtpu: 0.0.40
codegen_flags: <defaults>
</compile_context>

<pallas_src>
import functools

import jax
import jax.numpy as jnp
from jax.experimental import pallas as pl
from jax.experimental.pallas import tpu as pltpu


def _make_jacobi_kernel(L: int, alpha: float, beta: float):
    """Builds the Pallas kernel body for static (L, alpha, beta)."""
    # l == 1 constants.
    d1 = (alpha - beta) / 2.0
    e1 = (alpha + beta + 2.0) / 2.0
    # l >= 2 constants with the 1/c0 divide folded into the multipliers.
    recs = []
    for l in range(2, L + 1):
        c0 = 2 * l * (l + alpha + beta) * (2 * l + alpha + beta - 2)
        c1 = (2 * l + alpha + beta - 1) * (alpha ** 2 - beta ** 2)
        c2 = (2 * l + alpha + beta - 1) * (2 * l + alpha + beta) * (2 * l + alpha + beta - 2)
        c3 = 2 * (l + alpha - 1) * (l + beta - 1) * (2 * l + alpha + beta)
        recs.append((c1 / c0, c2 / c0, c3 / c0))

    def kernel(coef_ref, a_ref, x_ref, o_ref):
        # coef_ref: (L+1,) f32 in SMEM -- cumprod'ed gammas, already / (L+1)
        # a_ref:    (N, N)  f32 in VMEM -- normalized adjacency (full)
        # x_ref:    (N, tf) f32 in VMEM -- feature tile
        # o_ref:    (N, tf) f32 in VMEM -- output tile
        A = a_ref[...]
        z_prev = x_ref[...]                  # z_0 = x
        z_prev2 = None
        acc = coef_ref[0] * z_prev           # coef already includes 1/(L+1)

        # Static unroll over polynomial order; only z_{l-1}, z_{l-2}, Az and
        # acc stay live per iteration.
        for l in range(1, L + 1):
            Az = jnp.dot(A, z_prev, preferred_element_type=jnp.float32)
            if l == 1:
                if d1 != 0.0:
                    z = d1 * z_prev + e1 * Az
                else:
                    z = e1 * Az
            else:
                k1, k2, k3 = recs[l - 2]
                if k1 != 0.0:
                    z = k1 * z_prev + k2 * Az - k3 * z_prev2
                else:
                    z = k2 * Az - k3 * z_prev2
            acc = acc + coef_ref[l] * z
            z_prev2 = z_prev
            z_prev = z

        o_ref[...] = acc

    return kernel


def jacobi_conv_pallas(x, A, gammas, *, scaling_factor=3.0, L=3,
                       alpha=1.0, beta=1.0, tf=None):
    """Pallas implementation of JacobiConv.forward(x, A).

    x:      (N, F) float32 node features
    A:      (N, N) float32 normalized adjacency
    gammas: (L+1, 1) float32 (non-trainable module parameter)
    """
    N, F = x.shape
    assert A.shape == (N, N)
    assert gammas.shape == (L + 1, 1)

    # Tile-width selection: 256 matches the full 256-wide MXU on v6e/v7x and
    # keeps grid >= 2 for typical F (megacore work split on v7x); fall back to
    # 128, else take the whole (unaligned) feature axis in one block.
    if tf is None:
        if F % 256 == 0:
            tf = 256
        elif F % 128 == 0:
            tf = 128
        else:
            tf = F
    tf = min(tf, F)
    assert F % tf == 0, "feature dim must be divisible by the tile width"

    # Parameter glue stays in plain JAX:
    #   coefs = cumprod(tanh(gammas) * scaling_factor) / (L + 1)
    # (the /(L+1) of the mean is folded in here, removing a per-element
    #  divide + extra pass inside the kernel).
    coefs = jnp.cumprod(jnp.tanh(gammas.astype(jnp.float32)) * scaling_factor,
                        axis=0).reshape(-1) / jnp.float32(L + 1)

    kernel = _make_jacobi_kernel(L, float(alpha), float(beta))
    grid = (F // tf,)

    # VMEM budget: A (double-buffered slot by the pipeliner, but constant
    # index map -> DMA issued only once) + double-buffered x/out tiles + live
    # recurrence slabs (z_prev, z_prev2, Az, acc), plus ~1 MiB headroom.
    bytes_a = 2 * N * N * 4
    bytes_tiles = (2 + 2) * N * tf * 4
    bytes_live = 4 * N * tf * 4
    vmem_needed = bytes_a + bytes_tiles + bytes_live + (1 << 20)
    vmem_limit = int(min(max(vmem_needed, 16 * 1024 * 1024), 64 * 1024 * 1024))

    cost = pl.CostEstimate(
        flops=2 * L * N * N * F,
        transcendentals=0,
        bytes_accessed=4 * (N * N + 2 * N * F),
    )

    return pl.pallas_call(
        kernel,
        out_shape=jax.ShapeDtypeStruct((N, F), jnp.float32),
        grid_spec=pltpu.PrefetchScalarGridSpec(
            num_scalar_prefetch=0,
            grid=grid,
            in_specs=[
                # Small coefficient vector lives in SMEM (cheap scalar reads).
                pl.BlockSpec(memory_space=pltpu.MemorySpace.SMEM),
                # Full adjacency; constant index map -> DMA'd only once.
                pl.BlockSpec((N, N), lambda j: (0, 0)),
                # One feature tile per grid step.
                pl.BlockSpec((N, tf), lambda j: (0, j)),
            ],
            out_specs=pl.BlockSpec((N, tf), lambda j: (0, j)),
        ),
        compiler_params=pltpu.CompilerParams(
            dimension_semantics=("parallel",),
            vmem_limit_bytes=vmem_limit,
        ),
        cost_estimate=cost,
    )(coefs, A.astype(jnp.float32), x.astype(jnp.float32))


def jacobi_conv_ref(x, A, gammas, *, scaling_factor=3.0, L=3,
                    alpha=1.0, beta=1.0):
    """Pure-JAX reference mirroring the PyTorch module exactly."""
    zs = [x]
    for l in range(1, L + 1):
        Az = A @ zs[-1]
        if l == 1:
            c = (alpha - beta) / 2.0
            z = c * zs[-1] + (alpha + beta + 2.0) / 2.0 * Az
        else:
            c0 = 2 * l * (l + alpha + beta) * (2 * l + alpha + beta - 2)
            c1 = (2 * l + alpha + beta - 1) * (alpha ** 2 - beta ** 2)
            c2 = (2 * l + alpha + beta - 1) * (2 * l + alpha + beta) * (2 * l + alpha + beta - 2)
            c3 = 2 * (l + alpha - 1) * (l + beta - 1) * (2 * l + alpha + beta)
            z = (c1 * zs[-1] + c2 * Az - c3 * zs[-2]) / c0
        zs.append(z)
    coefs = jnp.cumprod(jnp.tanh(gammas) * scaling_factor, axis=0)  # (L+1, 1)
    zstack = jnp.stack(zs, axis=1)                                  # (N, L+1, F)
    return (zstack * coefs[None, :, :]).mean(axis=1)


if __name__ == "__main__":
    L = 3
    scaling_factor = 3.0
    alpha, beta = 1.0, 1.0
    N, F = 128, 512  # small synthetic graph: 128 nodes, 512 features

    key = jax.random.PRNGKey(0)
    kx, ka = jax.random.split(key)
    x = jax.random.normal(kx, (N, F), dtype=jnp.float32)

    # Deterministic row-normalized dense adjacency.
    raw = jax.random.uniform(ka, (N, N), dtype=jnp.float32)
    adj = (raw + raw.T) * 0.5
    A = adj / jnp.sum(adj, axis=1, keepdims=True)

    # Module parameter: gammas = full((L+1, 1), min(1/scaling_factor, 1.0)),
    # non-trainable, deterministic.
    gammas = jnp.full((L + 1, 1), min(1.0 / scaling_factor, 1.0),
                      dtype=jnp.float32)

    fwd = functools.partial(jacobi_conv_pallas, scaling_factor=scaling_factor,
                            L=L, alpha=alpha, beta=beta)
    out = fwd(x, A, gammas)
    out = jax.block_until_ready(out)

    ref = jacobi_conv_ref(x, A, gammas, scaling_factor=scaling_factor,
                          L=L, alpha=alpha, beta=beta)
    assert out.shape == (N, F)
    assert jnp.allclose(out, ref, rtol=1e-3, atol=1e-3), "mismatch vs reference"
    print("KERNEL_OK")
</pallas_src>

<mosaic_0001>
module attributes {stable_mosaic.version = 11 : i64} {
  func.func @kernel(%arg0: i32, %arg1: memref<4xf32, #tpu.memory_space<smem>>, %arg2: memref<128x128xf32, #tpu.memory_space<vmem>>, %arg3: memref<128x256xf32, #tpu.memory_space<vmem>>, %arg4: memref<128x256xf32, #tpu.memory_space<vmem>>) attributes {dimension_semantics = [#tpu.dimension_semantics<parallel>], iteration_bounds = array<i64: 2>, scalar_prefetch = 0 : i64, scratch_operands = 0 : i64, tpu.core_type = #tpu.core_type<tc>, window_params = [{transform_indices = @transform_0, window_bounds = array<i64: 4>}, {pipeline_mode = #tpu.pipeline_mode<synchronous>, transform_indices = @transform_1, window_bounds = array<i64: 128, 128>}, {transform_indices = @transform_2, window_bounds = array<i64: 128, 256>}, {transform_indices = @transform_3, window_bounds = array<i64: 128, 256>}]} {
    %c0 = arith.constant 0 : index
    %c0_0 = arith.constant 0 : index
    %0 = vector.load %arg2[%c0, %c0_0] : memref<128x128xf32, #tpu.memory_space<vmem>>, vector<128x128xf32>
    %c0_1 = arith.constant 0 : index
    %c0_2 = arith.constant 0 : index
    %1 = vector.load %arg3[%c0_1, %c0_2] : memref<128x256xf32, #tpu.memory_space<vmem>>, vector<128x256xf32>
    %c0_3 = arith.constant 0 : index
    %2 = memref.load %arg1[%c0_3] : memref<4xf32, #tpu.memory_space<smem>>
    %3 = vector.broadcast %2 : f32 to vector<128x256xf32>
    %4 = arith.mulf %3, %1 : vector<128x256xf32>
    %cst = arith.constant dense<0.000000e+00> : vector<128x256xf32>
    %5 = tpu.matmul %0, %1, %cst {dimension_numbers = #tpu.dot_dimension_numbers<[1], [0], [0], [1], [0, 0, 1, 1], [], []>} : vector<128x128xf32>, vector<128x256xf32>, vector<128x256xf32> -> vector<128x256xf32>
    %cst_4 = arith.constant 2.000000e+00 : f32
    %6 = vector.broadcast %cst_4 : f32 to vector<128x256xf32>
    %7 = arith.mulf %6, %5 : vector<128x256xf32>
    %c1 = arith.constant 1 : index
    %8 = memref.load %arg1[%c1] : memref<4xf32, #tpu.memory_space<smem>>
    %9 = vector.broadcast %8 : f32 to vector<128x256xf32>
    %10 = arith.mulf %9, %7 : vector<128x256xf32>
    %11 = arith.addf %4, %10 : vector<128x256xf32>
    %cst_5 = arith.constant dense<0.000000e+00> : vector<128x256xf32>
    %12 = tpu.matmul %0, %7, %cst_5 {dimension_numbers = #tpu.dot_dimension_numbers<[1], [0], [0], [1], [0, 0, 1, 1], [], []>} : vector<128x128xf32>, vector<128x256xf32>, vector<128x256xf32> -> vector<128x256xf32>
    %cst_6 = arith.constant 1.875000e+00 : f32
    %13 = vector.broadcast %cst_6 : f32 to vector<128x256xf32>
    %14 = arith.mulf %13, %12 : vector<128x256xf32>
    %cst_7 = arith.constant 7.500000e-01 : f32
    %15 = vector.broadcast %cst_7 : f32 to vector<128x256xf32>
    %16 = arith.mulf %15, %1 : vector<128x256xf32>
    %17 = arith.subf %14, %16 : vector<128x256xf32>
    %c2 = arith.constant 2 : index
    %18 = memref.load %arg1[%c2] : memref<4xf32, #tpu.memory_space<smem>>
    %19 = vector.broadcast %18 : f32 to vector<128x256xf32>
    %20 = arith.mulf %19, %17 : vector<128x256xf32>
    %21 = arith.addf %11, %20 : vector<128x256xf32>
    %cst_8 = arith.constant dense<0.000000e+00> : vector<128x256xf32>
    %22 = tpu.matmul %0, %17, %cst_8 {dimension_numbers = #tpu.dot_dimension_numbers<[1], [0], [0], [1], [0, 0, 1, 1], [], []>} : vector<128x128xf32>, vector<128x256xf32>, vector<128x256xf32> -> vector<128x256xf32>
    %cst_9 = arith.constant 1.86666667 : f32
    %23 = vector.broadcast %cst_9 : f32 to vector<128x256xf32>
    %24 = arith.mulf %23, %22 : vector<128x256xf32>
    %cst_10 = arith.constant 8.000000e-01 : f32
    %25 = vector.broadcast %cst_10 : f32 to vector<128x256xf32>
    %26 = arith.mulf %25, %7 : vector<128x256xf32>
    %27 = arith.subf %24, %26 : vector<128x256xf32>
    %c3 = arith.constant 3 : index
    %28 = memref.load %arg1[%c3] : memref<4xf32, #tpu.memory_space<smem>>
    %29 = vector.broadcast %28 : f32 to vector<128x256xf32>
    %30 = arith.mulf %29, %27 : vector<128x256xf32>
    %31 = arith.addf %21, %30 : vector<128x256xf32>
    %c0_11 = arith.constant 0 : index
    %c0_12 = arith.constant 0 : index
    %32 = vector.load %arg4[%c0_11, %c0_12] : memref<128x256xf32, #tpu.memory_space<vmem>>, vector<128x256xf32>
    tpu.vector_store %arg4[%c0_11, %c0_12], %31 {strides = array<i32>} : memref<128x256xf32, #tpu.memory_space<vmem>>, vector<128x256xf32>,
    return
  }
  func.func @transform_0(%arg0: i32) -> i32 {
    %c0_i32 = arith.constant 0 : i32
    %c0_i32_0 = arith.constant 0 : i32
    return %c0_i32 : i32
  }
  func.func @transform_1(%arg0: i32) -> (i32, i32) {
    %c0_i32 = arith.constant 0 : i32
    %c0_i32_0 = arith.constant 0 : i32
    %c0_i32_1 = arith.constant 0 : i32
    return %c0_i32, %c0_i32_0 : i32, i32
  }
  func.func @transform_2(%arg0: i32) -> (i32, i32) {
    %c0_i32 = arith.constant 0 : i32
    %c0_i32_0 = arith.constant 0 : i32
    return %c0_i32, %arg0 : i32, i32
  }
  func.func @transform_3(%arg0: i32) -> (i32, i32) {
    %c0_i32 = arith.constant 0 : i32
    %c0_i32_0 = arith.constant 0 : i32
    return %c0_i32, %arg0 : i32, i32
  }
}

</mosaic_0001>

<llo_original>
// kernel: tpu_custom_call.1
$region0: #{tpu_custom_call.1}
  #allocation0 [shape = 'u32[]', space=smem, size = 0x4, offset = 0x4, fixed_abs, tag = 'smem constant byte address 0x4 - core index']
  #allocation1 [shape = 'u32[144,128]{1,0:T(1,128)}', space=vmem, size = 0x12000, scoped, tag = 'internal scratch']
  %s0 = inlined_call_operand.hbm [shape: f32[4], index: 0, kind: input, shape index: {}]
  %s1 = inlined_call_operand.hbm [shape: f32[128,128], index: 1, kind: input, shape index: {}]
  %s2 = inlined_call_operand.hbm [shape: f32[128,512], index: 2, kind: input, shape index: {}]
  %s3 = inlined_call_operand.hbm [shape: f32[128,512], index: 3, kind: output, shape index: {}]
  %s4 = sld [smem:[#allocation0]]
  $region57: #{tpu_custom_call.1} parent=0
    _
  %s6 = ssub.s32 1, %s4
  %s7 = scalar_select 0, %s6, %s4
  $region1: #{tpu_custom_call.1} parent=0
    #allocation2 [shape = 'u8[512]{0}', space=smem, size = 0x200, scoped, tag = 'input window, operand 0, single buffered']
    #allocation3 [shape = 's32[2]{0}', space=sflag, size = 0x8, scoped, tag = 'scoped memory for tpu_custom_call.1']
    #allocation4 [shape = 's32[2]{0}', space=sflag, size = 0x8, scoped, tag = 'scoped memory for tpu_custom_call.1']
    #allocation5 [shape = 's32[2]{0}', space=sflag, size = 0x8, scoped, tag = 'scoped memory for tpu_custom_call.1']
    #allocation6 [shape = 'u8[65536]{0}', space=vmem, size = 0x10000, scoped, tag = 'input window, operand 1, single buffered']
    #allocation7 [shape = 'u8[262144]{0}', space=vmem, size = 0x40000, scoped, tag = 'input window, operand 2']
    #allocation8 [shape = 's32[2]{0}', space=sflag, size = 0x8, scoped, tag = 'scoped memory for tpu_custom_call.1']
    #allocation9 [shape = 'u8[262144]{0}', space=vmem, size = 0x40000, scoped, tag = 'output window, operand 0']
    %8 = vsyncpa [#allocation5], 0
    %9 = vsyncpa [#allocation3], 0
    %10 = vsyncpa [#allocation8], 0
    %s11 = scalar_lea.sflag [#allocation8], 1
    %12 = vsyncpa %s11, 0
    %13 = vsyncpa [#allocation4], 0
    %s14 = scalar_lea.sflag [#allocation4], 1
    %15 = vsyncpa %s14, 0
    loop: start=0, step=1, limit=4
    $region2: #{tpu_custom_call.1} parent=1 // loop_pre_header
      _
    $region3: #{tpu_custom_call.1} parent=1 // loop_header
      %s17 = sphi 0, %s21
      %p18 = scmp.ge.s32.totalorder %s17, 4
      %s25 = sphi 0, %s25
      %s27 = sphi 0, %s25
      %s28 = sphi 0, %s27
      %s42 = sphi 0, %s28
      %s46 = sphi 0, %s46
      %s48 = sphi 0, %s46
      %s49 = sphi 0, %s48
      %s63 = sphi 0, %s49
      %s69 = sphi 0, %s71
      %s72 = sphi 0, %s69
      %s73 = sphi 0, %s72
      %s89 = sphi 0, %s73
      %s95 = sphi 0, %s97
      %s98 = sphi 0, %s95
      %s99 = sphi 0, %s98
      %s115 = sphi 0, %s99
    $region4: #{tpu_custom_call.1} parent=1 // loop_header_branch
      %20 = sbr.rel (%p18) target = $region8
    $region5: #{tpu_custom_call.1} parent=1 // loop_body
      %s22 = ssub.s32 %s17, 1
      %s23 = ssub.s32 %s17, 2
      %s24 = sadd.s32 %s17, 1
      %s26 = sadd.s32 %s25, 1
      %p29 = scmp.eq.s32.totalorder %s17, 1
      %p30 = scmp.ne.s32.totalorder %s25, %s27
      %p31 = scmp.eq.s32.totalorder %s17, 0
      %p32 = por %p30, %p31
      %p33 = scmp.ne.s32.totalorder %s25, %s27
      %p34 = scmp.eq.s32.totalorder %s22, 1
      %p35 = por %p33, %p34
      %p36 = scmp.ne.s32.totalorder %s27, %s28
      %p37 = scmp.eq.s32.totalorder %s22, 0
      %p38 = por %p36, %p37
      %p39 = scmp.ne.s32.totalorder %s27, %s28
      %p40 = scmp.eq.s32.totalorder %s23, 1
      %p41 = por %p39, %p40
      %p43 = scmp.ne.s32.totalorder %s28, %s42
      %p44 = scmp.eq.s32.totalorder %s23, 0
      %p45 = por %p43, %p44
      %s47 = sadd.s32 %s46, 1
      %p50 = scmp.eq.s32.totalorder %s17, 1
      %p51 = scmp.ne.s32.totalorder %s46, %s48
      %p52 = scmp.eq.s32.totalorder %s17, 0
      %p53 = por %p51, %p52
      %p54 = scmp.ne.s32.totalorder %s46, %s48
      %p55 = scmp.eq.s32.totalorder %s22, 1
      %p56 = por %p54, %p55
      %p57 = scmp.ne.s32.totalorder %s48, %s49
      %p58 = scmp.eq.s32.totalorder %s22, 0
      %p59 = por %p57, %p58
      %p60 = scmp.ne.s32.totalorder %s48, %s49
      %p61 = scmp.eq.s32.totalorder %s23, 1
      %p62 = por %p60, %p61
      %p64 = scmp.ne.s32.totalorder %s49, %s63
      %p65 = scmp.eq.s32.totalorder %s23, 0
      %p66 = por %p64, %p65
      %s67 = ssub.s32 %s17, %s24
      %p68 = scmp.eq.s32.totalorder %s67, 0
      %s70 = sadd.s32 %s69, 1
      %s71 = scalar_select %p68, %s69, %s70
      %p74 = pneg %p68
      %p75 = scmp.eq.s32.totalorder %s17, 1
      %p76 = por %p74, %p75
      %p77 = scmp.ne.s32.totalorder %s69, %s72
      %p78 = scmp.eq.s32.totalorder %s17, 0
      %p79 = por %p77, %p78
      %p80 = scmp.ne.s32.totalorder %s69, %s72
      %p81 = scmp.eq.s32.totalorder %s22, 1
      %p82 = por %p80, %p81
      %p83 = scmp.ne.s32.totalorder %s72, %s73
      %p84 = scmp.eq.s32.totalorder %s22, 0
      %p85 = por %p83, %p84
      %p86 = scmp.ne.s32.totalorder %s72, %s73
      %p87 = scmp.eq.s32.totalorder %s23, 1
      %p88 = por %p86, %p87
      %p90 = scmp.ne.s32.totalorder %s73, %s89
      %p91 = scmp.eq.s32.totalorder %s23, 0
      %p92 = por %p90, %p91
      %s93 = ssub.s32 %s17, %s24
      %p94 = scmp.eq.s32.totalorder %s93, 0
      %s96 = sadd.s32 %s95, 1
      %s97 = scalar_select %p94, %s95, %s96
      %p100 = pneg %p94
      %p101 = scmp.eq.s32.totalorder %s17, 1
      %p102 = por %p100, %p101
      %p103 = scmp.ne.s32.totalorder %s95, %s98
      %p104 = scmp.eq.s32.totalorder %s17, 0
      %p105 = por %p103, %p104
      %p106 = scmp.ne.s32.totalorder %s95, %s98
      %p107 = scmp.eq.s32.totalorder %s22, 1
      %p108 = por %p106, %p107
      %p109 = scmp.ne.s32.totalorder %s98, %s99
      %p110 = scmp.eq.s32.totalorder %s22, 0
      %p111 = por %p109, %p110
      %p112 = scmp.ne.s32.totalorder %s98, %s99
      %p113 = scmp.eq.s32.totalorder %s23, 1
      %p114 = por %p112, %p113
      %p116 = scmp.ne.s32.totalorder %s99, %s115
      %p117 = scmp.eq.s32.totalorder %s23, 0
      %p118 = por %p116, %p117
      %p119 = scmp.le.s32.totalorder 1, %s17
      %p120 = scmp.lt.s32.totalorder %s17, 3
      %p121 = pnand %p119, %p120
      %p122 = pneg %p121
      // Predicated region
      $region9: #{tpu_custom_call.1} parent=5 // pred_check
        _
      $region10: #{tpu_custom_call.1} parent=5 // pred_check_branch
        %124 = sbr.rel (%p121) target = $region12
      $region11: #{tpu_custom_call.1} parent=5 // pred_region
        %s125 = ssub.s32 %s17, 1
        // Predicated region
        $region13: #{tpu_custom_call.1} parent=11 // pred_check
          %p126 = pneg %p38
        $region14: #{tpu_custom_call.1} parent=11 // pred_check_branch
          %128 = sbr.rel (%p126) target = $region16
        $region15: #{tpu_custom_call.1} parent=11 // pred_region
          %s130 = ssub.s32 16, 16
          %131 = vsyncadd [#allocation5], %s130
          %134 = dma.hbm_to_smem %s0, 16, [#allocation2], [#allocation5]
        $region16: #{tpu_custom_call.1} parent=11 // pred_fallthru
          _
        // Predicated region
        $region17: #{tpu_custom_call.1} parent=11 // pred_check
          %p135 = pneg %p59
        $region18: #{tpu_custom_call.1} parent=11 // pred_check_branch
          %137 = sbr.rel (%p135) target = $region20
        $region19: #{tpu_custom_call.1} parent=11 // pred_region
          %s139 = ssub.s32 2048, 2048
          %140 = vsyncadd [#allocation3], %s139
          %s141 = sshll.u32 [#allocation6], 4
          %s142 = int_to_ptr.vmem [resolvable:$true] %s141
          %147 = dma.hbm_to_vmem [thread:$0]  %s1, 2048, %s142, [#allocation3], 128, 128, 8
        $region20: #{tpu_custom_call.1} parent=11 // pred_fallthru
          _
      $region12: #{tpu_custom_call.1} parent=5 // pred_fallthru
        _
      %p148 = scmp.lt.s32.totalorder %s17, 2
      // Predicated region
      $region21: #{tpu_custom_call.1} parent=5 // pred_check
        %p149 = pneg %p148
      $region22: #{tpu_custom_call.1} parent=5 // pred_check_branch
        %151 = sbr.rel (%p149) target = $region24
      $region23: #{tpu_custom_call.1} parent=5 // pred_region
        // Predicated region
        $region25: #{tpu_custom_call.1} parent=23 // pred_check
          %p152 = pneg %p79
        $region26: #{tpu_custom_call.1} parent=23 // pred_check_branch
          %154 = sbr.rel (%p152) target = $region28
        $region27: #{tpu_custom_call.1} parent=23 // pred_region
          %s155 = sand.u32 %s69, 1
          %s156 = scalar_lea.sflag [#allocation8], %s155
          %s157 = sand.u32 %s69, 1
          %s158 = smul.addr %s157, 256
          %s159 = scalar_lea.vmem [#allocation7], %s158
          %s160 = smul.u32 2, %s17
          %s162 = ssub.s32 4096, 4096
          %163 = vsyncadd %s156, %s162
          %s164 = smul.addr %s160, 128
          %s165 = scalar_lea.hbm %s2, %s164
          %s166 = sshll.u32 %s159, 4
          %s167 = int_to_ptr.vmem [resolvable:$true] %s166
          %172 = dma.hbm_to_vmem [thread:$0]  %s165, 4096, %s167, %s156, 512, 256, 16
        $region28: #{tpu_custom_call.1} parent=23 // pred_fallthru
          _
      $region24: #{tpu_custom_call.1} parent=5 // pred_fallthru
        _
      %p173 = scmp.le.s32.totalorder 1, %s17
      %p174 = scmp.lt.s32.totalorder %s17, 3
      %p175 = pnand %p173, %p174
      %p176 = pneg %p175
      // Predicated region
      $region29: #{tpu_custom_call.1} parent=5 // pred_check
        _
      $region30: #{tpu_custom_call.1} parent=5 // pred_check_branch
        %178 = sbr.rel (%p175) target = $region32
      $region31: #{tpu_custom_call.1} parent=5 // pred_region
        %s179 = ssub.s32 %s17, 1
        // Predicated region
        $region33: #{tpu_custom_call.1} parent=31 // pred_check
          %p180 = pneg %p38
        $region34: #{tpu_custom_call.1} parent=31 // pred_check_branch
          %182 = sbr.rel (%p180) target = $region36
        $region35: #{tpu_custom_call.1} parent=31 // pred_region
          %183 = dma.done [#allocation5], 16
        $region36: #{tpu_custom_call.1} parent=31 // pred_fallthru
          _
        // Predicated region
        $region37: #{tpu_custom_call.1} parent=31 // pred_check
          %p184 = pneg %p59
        $region38: #{tpu_custom_call.1} parent=31 // pred_check_branch
          %186 = sbr.rel (%p184) target = $region40
        $region39: #{tpu_custom_call.1} parent=31 // pred_region
          %187 = dma.done [#allocation3], 2048
        $region40: #{tpu_custom_call.1} parent=31 // pred_fallthru
          _
        %s188 = sand.u32 %s72, 1
        %s189 = scalar_lea.sflag [#allocation8], %s188
        %s190 = sand.u32 %s72, 1
        %s191 = smul.addr %s190, 256
        %s192 = scalar_lea.vmem [#allocation7], %s191
        // Predicated region
        $region41: #{tpu_custom_call.1} parent=31 // pred_check
          %p193 = pneg %p85
        $region42: #{tpu_custom_call.1} parent=31 // pred_check_branch
          %195 = sbr.rel (%p193) target = $region44
        $region43: #{tpu_custom_call.1} parent=31 // pred_region
          %196 = dma.done %s189, 4096
        $region44: #{tpu_custom_call.1} parent=31 // pred_fallthru
          _
        %197 = sfence
        %p198 = pneg %p38
        %p199 = pneg %p35
        %p200 = pneg %p59
        %p201 = pneg %p56
        %s202 = sand.u32 %s72, 1
        %s203 = scalar_lea.sflag [#allocation8], %s202
        %s204 = sand.u32 %s72, 1
        %s205 = smul.addr %s204, 256
        %s206 = scalar_lea.vmem [#allocation7], %s205
        %p207 = pneg %p85
        %p208 = pneg %p82
        %p209 = pneg %p111
        %p210 = pneg %p108
        %s211 = sand.u32 %s98, 1
        %s212 = scalar_lea.sflag [#allocation4], %s211
        %s213 = sand.u32 %s98, 1
        %s214 = smul.addr %s213, 256
        %s215 = scalar_lea.vmem [#allocation9], %s214
        %s216 = smul.u32 2, %s22
        %s217 = smul.u32 2, %s22
        %v218 = vld [vmem:[#allocation6] sm:$0xff]
        %v219 = vld [vmem:[#allocation6 + $0x8] sm:$0xff]
        %v220 = vld [vmem:[#allocation6 + $0x10] sm:$0xff]
        %v221 = vld [vmem:[#allocation6 + $0x18] sm:$0xff]
        %v222 = vld [vmem:[#allocation6 + $0x20] sm:$0xff]
        %v223 = vld [vmem:[#allocation6 + $0x28] sm:$0xff]
        %v224 = vld [vmem:[#allocation6 + $0x30] sm:$0xff]
        %v225 = vld [vmem:[#allocation6 + $0x38] sm:$0xff]
        %v226 = vld [vmem:[#allocation6 + $0x40] sm:$0xff]
        %v227 = vld [vmem:[#allocation6 + $0x48] sm:$0xff]
        %v228 = vld [vmem:[#allocation6 + $0x50] sm:$0xff]
        %v229 = vld [vmem:[#allocation6 + $0x58] sm:$0xff]
        %v230 = vld [vmem:[#allocation6 + $0x60] sm:$0xff]
        %v231 = vld [vmem:[#allocation6 + $0x68] sm:$0xff]
        %v232 = vld [vmem:[#allocation6 + $0x70] sm:$0xff]
        %v233 = vld [vmem:[#allocation6 + $0x78] sm:$0xff]
        %v234 = vld [vmem:[%s192] sm:$0xff]
        %v235 = vld [vmem:[%s192 + $0x8] sm:$0xff]
        %v236 = vld [vmem:[%s192 + $0x10] sm:$0xff]
        %v237 = vld [vmem:[%s192 + $0x18] sm:$0xff]
        %v238 = vld [vmem:[%s192 + $0x20] sm:$0xff]
        %v239 = vld [vmem:[%s192 + $0x28] sm:$0xff]
        %v240 = vld [vmem:[%s192 + $0x30] sm:$0xff]
        %v241 = vld [vmem:[%s192 + $0x38] sm:$0xff]
        %v242 = vld [vmem:[%s192 + $0x40] sm:$0xff]
        %v243 = vld [vmem:[%s192 + $0x48] sm:$0xff]
        %v244 = vld [vmem:[%s192 + $0x50] sm:$0xff]
        %v245 = vld [vmem:[%s192 + $0x58] sm:$0xff]
        %v246 = vld [vmem:[%s192 + $0x60] sm:$0xff]
        %v247 = vld [vmem:[%s192 + $0x68] sm:$0xff]
        %v248 = vld [vmem:[%s192 + $0x70] sm:$0xff]
        %v249 = vld [vmem:[%s192 + $0x78] sm:$0xff]
        %v250 = vld [vmem:[%s192 + $0x80] sm:$0xff]
        %v251 = vld [vmem:[%s192 + $0x88] sm:$0xff]
        %v252 = vld [vmem:[%s192 + $0x90] sm:$0xff]
        %v253 = vld [vmem:[%s192 + $0x98] sm:$0xff]
        %v254 = vld [vmem:[%s192 + $0xa0] sm:$0xff]
        %v255 = vld [vmem:[%s192 + $0xa8] sm:$0xff]
        %v256 = vld [vmem:[%s192 + $0xb0] sm:$0xff]
        %v257 = vld [vmem:[%s192 + $0xb8] sm:$0xff]
        %v258 = vld [vmem:[%s192 + $0xc0] sm:$0xff]
        %v259 = vld [vmem:[%s192 + $0xc8] sm:$0xff]
        %v260 = vld [vmem:[%s192 + $0xd0] sm:$0xff]
        %v261 = vld [vmem:[%s192 + $0xd8] sm:$0xff]
        %v262 = vld [vmem:[%s192 + $0xe0] sm:$0xff]
        %v263 = vld [vmem:[%s192 + $0xe8] sm:$0xff]
        %v264 = vld [vmem:[%s192 + $0xf0] sm:$0xff]
        %v265 = vld [vmem:[%s192 + $0xf8] sm:$0xff]
        %s266 = sld [smem:[#allocation2]]
        %v267 = vstv %s266
        %v268 = vmul.f32 %v267, %v234
        %v269 = vmul.f32 %v267, %v235
        %v270 = vmul.f32 %v267, %v236
        %v271 = vmul.f32 %v267, %v237
        %v272 = vmul.f32 %v267, %v238
        %v273 = vmul.f32 %v267, %v239
        %v274 = vmul.f32 %v267, %v240
        %v275 = vmul.f32 %v267, %v241
        %v276 = vmul.f32 %v267, %v242
        %v277 = vmul.f32 %v267, %v243
        %v278 = vmul.f32 %v267, %v244
        %v279 = vmul.f32 %v267, %v245
        %v280 = vmul.f32 %v267, %v246
        %v281 = vmul.f32 %v267, %v247
        %v282 = vmul.f32 %v267, %v248
        %v283 = vmul.f32 %v267, %v249
        %v284 = vmul.f32 %v267, %v250
        %v285 = vmul.f32 %v267, %v251
        %v286 = vmul.f32 %v267, %v252
        %v287 = vmul.f32 %v267, %v253
        %v288 = vmul.f32 %v267, %v254
        %v289 = vmul.f32 %v267, %v255
        %v290 = vmul.f32 %v267, %v256
        %v291 = vmul.f32 %v267, %v257
        %v292 = vmul.f32 %v267, %v258
        %v293 = vmul.f32 %v267, %v259
        %v294 = vmul.f32 %v267, %v260
        %v295 = vmul.f32 %v267, %v261
        %v296 = vmul.f32 %v267, %v262
        %v297 = vmul.f32 %v267, %v263
        %v298 = vmul.f32 %v267, %v264
        %v299 = vmul.f32 %v267, %v265
        %300 = vmatprep.subr.mxu0 %v265
        %301 = vmatpush1.msra.mxu0 %v264
        %302 = vmatprep.subr.mxu0 %v263
        %303 = vmatpush1.msra.mxu0 %v262
        %304 = vmatprep.subr.mxu0 %v261
        %305 = vmatpush1.msra.mxu0 %v260
        %306 = vmatprep.subr.mxu0 %v259
        %307 = vmatpush1.msra.mxu0 %v258
        %308 = vmatprep.subr.mxu0 %v257
        %309 = vmatpush1.msra.mxu0 %v256
        %310 = vmatprep.subr.mxu0 %v255
        %311 = vmatpush1.msra.mxu0 %v254
        %312 = vmatprep.subr.mxu0 %v253
        %313 = vmatpush1.msra.mxu0 %v252
        %314 = vmatprep.subr.mxu0 %v251
        %315 = vmatpush1.msra.mxu0 %v250
        %316 = vmatprep.subr.mxu0 %v249
        %317 = vmatpush1.msra.mxu0 %v248
        %318 = vmatprep.subr.mxu0 %v247
        %319 = vmatpush1.msra.mxu0 %v246
        %320 = vmatprep.subr.mxu0 %v245
        %321 = vmatpush1.msra.mxu0 %v244
        %322 = vmatprep.subr.mxu0 %v243
        %323 = vmatpush1.msra.mxu0 %v242
        %324 = vmatprep.subr.mxu0 %v241
        %325 = vmatpush1.msra.mxu0 %v240
        %326 = vmatprep.subr.mxu0 %v239
        %327 = vmatpush1.msra.mxu0 %v238
        %328 = vmatprep.subr.mxu0 %v237
        %329 = vmatpush1.msra.mxu0 %v236
        %330 = vmatprep.subr.mxu0 %v235
        %331 = vmatpush1.msra.mxu0 %v234
        %332 = vmatprep.subr.mxu0 0.0
        %333 = vmatpush2.msra.mxu0 0.0
        %334 = vmatprep.subr.mxu0 0.0
        %335 = vmatpush2.msra.mxu0 0.0
        %336 = vmatprep.subr.mxu0 0.0
        %337 = vmatpush2.msra.mxu0 0.0
        %338 = vmatprep.subr.mxu0 0.0
        %339 = vmatpush2.msra.mxu0 0.0
        %340 = vmatprep.subr.mxu0 0.0
        %341 = vmatpush2.msra.mxu0 0.0
        %342 = vmatprep.subr.mxu0 0.0
        %343 = vmatpush2.msra.mxu0 0.0
        %344 = vmatprep.subr.mxu0 0.0
        %345 = vmatpush2.msra.mxu0 0.0
        %346 = vmatprep.subr.mxu0 0.0
        %347 = vmatpush2.msra.mxu0 0.0
        %348 = vmatprep.subr.mxu0 0.0
        %349 = vmatpush2.msra.mxu0 0.0
        %350 = vmatprep.subr.mxu0 0.0
        %351 = vmatpush2.msra.mxu0 0.0
        %352 = vmatprep.subr.mxu0 0.0
        %353 = vmatpush2.msra.mxu0 0.0
        %354 = vmatprep.subr.mxu0 0.0
        %355 = vmatpush2.msra.mxu0 0.0
        %356 = vmatprep.subr.mxu0 0.0
        %357 = vmatpush2.msra.mxu0 0.0
        %358 = vmatprep.subr.mxu0 0.0
        %359 = vmatpush2.msra.mxu0 0.0
        %360 = vmatprep.subr.mxu0 0.0
        %361 = vmatpush2.msra.mxu0 0.0
        %362 = vmatprep.subr.mxu0 0.0
        %363 = vmatpush2.msra.mxu0 0.0
        %364 = vmatprep.mubr.f32.mxu0 0.0
        %365 = vmatmul.mubr.f32.gmra.mxu0 %v218
        %v366 = vpop.f32.mrf.mxu0
        %v367 = vadd.f32 0.0, %v366
        %v368 = vpop.f32.mrf.mxu0
        %v369 = vadd.f32 0.0, %v368
        %370 = vmatprep.mubr.f32.mxu0 0.0
        %371 = vmatmul.mubr.f32.gmra.mxu0 %v219
        %v372 = vpop.f32.mrf.mxu0
        %v373 = vadd.f32 0.0, %v372
        %v374 = vpop.f32.mrf.mxu0
        %v375 = vadd.f32 0.0, %v374
        %376 = vmatprep.mubr.f32.mxu0 0.0
        %377 = vmatmul.mubr.f32.gmra.mxu0 %v220
        %v378 = vpop.f32.mrf.mxu0
        %v379 = vadd.f32 0.0, %v378
        %v380 = vpop.f32.mrf.mxu0
        %v381 = vadd.f32 0.0, %v380
        %382 = vmatprep.mubr.f32.mxu0 0.0
        %383 = vmatmul.mubr.f32.gmra.mxu0 %v221
        %v384 = vpop.f32.mrf.mxu0
        %v385 = vadd.f32 0.0, %v384
        %v386 = vpop.f32.mrf.mxu0
        %v387 = vadd.f32 0.0, %v386
        %388 = vmatprep.mubr.f32.mxu0 0.0
        %389 = vmatmul.mubr.f32.gmra.mxu0 %v222
        %v390 = vpop.f32.mrf.mxu0
        %v391 = vadd.f32 0.0, %v390
        %v392 = vpop.f32.mrf.mxu0
        %v393 = vadd.f32 0.0, %v392
        %394 = vmatprep.mubr.f32.mxu0 0.0
        %395 = vmatmul.mubr.f32.gmra.mxu0 %v223
        %v396 = vpop.f32.mrf.mxu0
        %v397 = vadd.f32 0.0, %v396
        %v398 = vpop.f32.mrf.mxu0
        %v399 = vadd.f32 0.0, %v398
        %400 = vmatprep.mubr.f32.mxu0 0.0
        %401 = vmatmul.mubr.f32.gmra.mxu0 %v224
        %v402 = vpop.f32.mrf.mxu0
        %v403 = vadd.f32 0.0, %v402
        %v404 = vpop.f32.mrf.mxu0
        %v405 = vadd.f32 0.0, %v404
        %406 = vmatprep.mubr.f32.mxu0 0.0
        %407 = vmatmul.mubr.f32.gmra.mxu0 %v225
        %v408 = vpop.f32.mrf.mxu0
        %v409 = vadd.f32 0.0, %v408
        %v410 = vpop.f32.mrf.mxu0
        %v411 = vadd.f32 0.0, %v410
        %412 = vmatprep.mubr.f32.mxu0 0.0
        %413 = vmatmul.mubr.f32.gmra.mxu0 %v226
        %v414 = vpop.f32.mrf.mxu0
        %v415 = vadd.f32 0.0, %v414
        %v416 = vpop.f32.mrf.mxu0
        %v417 = vadd.f32 0.0, %v416
        %418 = vmatprep.mubr.f32.mxu0 0.0
        %419 = vmatmul.mubr.f32.gmra.mxu0 %v227
        %v420 = vpop.f32.mrf.mxu0
        %v421 = vadd.f32 0.0, %v420
        %v422 = vpop.f32.mrf.mxu0
        %v423 = vadd.f32 0.0, %v422
        %424 = vmatprep.mubr.f32.mxu0 0.0
        %425 = vmatmul.mubr.f32.gmra.mxu0 %v228
        %v426 = vpop.f32.mrf.mxu0
        %v427 = vadd.f32 0.0, %v426
        %v428 = vpop.f32.mrf.mxu0
        %v429 = vadd.f32 0.0, %v428
        %430 = vmatprep.mubr.f32.mxu0 0.0
        %431 = vmatmul.mubr.f32.gmra.mxu0 %v229
        %v432 = vpop.f32.mrf.mxu0
        %v433 = vadd.f32 0.0, %v432
        %v434 = vpop.f32.mrf.mxu0
        %v435 = vadd.f32 0.0, %v434
        %436 = vmatprep.mubr.f32.mxu0 0.0
        %437 = vmatmul.mubr.f32.gmra.mxu0 %v230
        %v438 = vpop.f32.mrf.mxu0
        %v439 = vadd.f32 0.0, %v438
        %v440 = vpop.f32.mrf.mxu0
        %v441 = vadd.f32 0.0, %v440
        %442 = vmatprep.mubr.f32.mxu0 0.0
        %443 = vmatmul.mubr.f32.gmra.mxu0 %v231
        %v444 = vpop.f32.mrf.mxu0
        %v445 = vadd.f32 0.0, %v444
        %v446 = vpop.f32.mrf.mxu0
        %v447 = vadd.f32 0.0, %v446
        %448 = vmatprep.mubr.f32.mxu0 0.0
        %449 = vmatmul.mubr.f32.gmra.mxu0 %v232
        %v450 = vpop.f32.mrf.mxu0
        %v451 = vadd.f32 0.0, %v450
        %v452 = vpop.f32.mrf.mxu0
        %v453 = vadd.f32 0.0, %v452
        %454 = vmatprep.mubr.f32.mxu0 0.0
        %455 = vmatmul.mubr.f32.gmra.mxu0 %v233
        %v456 = vpop.f32.mrf.mxu0
        %v457 = vadd.f32 0.0, %v456
        %v458 = vpop.f32.mrf.mxu0
        %v459 = vadd.f32 0.0, %v458
        %460 = vdwg.mxu0
        %v461 = vmul.f32 %v367, 2.0
        %v462 = vmul.f32 %v369, 2.0
        %v463 = vmul.f32 %v373, 2.0
        %v464 = vmul.f32 %v375, 2.0
        %v465 = vmul.f32 %v379, 2.0
        %v466 = vmul.f32 %v381, 2.0
        %v467 = vmul.f32 %v385, 2.0
        %v468 = vmul.f32 %v387, 2.0
        %v469 = vmul.f32 %v391, 2.0
        %v470 = vmul.f32 %v393, 2.0
        %v471 = vmul.f32 %v397, 2.0
        %v472 = vmul.f32 %v399, 2.0
        %v473 = vmul.f32 %v403, 2.0
        %v474 = vmul.f32 %v405, 2.0
        %v475 = vmul.f32 %v409, 2.0
        %v476 = vmul.f32 %v411, 2.0
        %v477 = vmul.f32 %v415, 2.0
        %v478 = vmul.f32 %v417, 2.0
        %v479 = vmul.f32 %v421, 2.0
        %v480 = vmul.f32 %v423, 2.0
        %v481 = vmul.f32 %v427, 2.0
        %v482 = vmul.f32 %v429, 2.0
        %v483 = vmul.f32 %v433, 2.0
        %v484 = vmul.f32 %v435, 2.0
        %v485 = vmul.f32 %v439, 2.0
        %v486 = vmul.f32 %v441, 2.0
        %v487 = vmul.f32 %v445, 2.0
        %v488 = vmul.f32 %v447, 2.0
        %v489 = vmul.f32 %v451, 2.0
        %v490 = vmul.f32 %v453, 2.0
        %v491 = vmul.f32 %v457, 2.0
        %v492 = vmul.f32 %v459, 2.0
        %s493 = sld [smem:[#allocation2 + $0x1]]
        %v494 = vstv %s493
        %v495 = vmul.f32 %v494, %v461
        %v496 = vmul.f32 %v494, %v462
        %v497 = vmul.f32 %v494, %v463
        %v498 = vmul.f32 %v494, %v464
        %v499 = vmul.f32 %v494, %v465
        %v500 = vmul.f32 %v494, %v466
        %v501 = vmul.f32 %v494, %v467
        %v502 = vmul.f32 %v494, %v468
        %v503 = vmul.f32 %v494, %v469
        %v504 = vmul.f32 %v494, %v470
        %v505 = vmul.f32 %v494, %v471
        %v506 = vmul.f32 %v494, %v472
        %v507 = vmul.f32 %v494, %v473
        %v508 = vmul.f32 %v494, %v474
        %v509 = vmul.f32 %v494, %v475
        %v510 = vmul.f32 %v494, %v476
        %v511 = vmul.f32 %v494, %v477
        %v512 = vmul.f32 %v494, %v478
        %v513 = vmul.f32 %v494, %v479
        %v514 = vmul.f32 %v494, %v480
        %v515 = vmul.f32 %v494, %v481
        %v516 = vmul.f32 %v494, %v482
        %v517 = vmul.f32 %v494, %v483
        %v518 = vmul.f32 %v494, %v484
        %v519 = vmul.f32 %v494, %v485
        %v520 = vmul.f32 %v494, %v486
        %v521 = vmul.f32 %v494, %v487
        %v522 = vmul.f32 %v494, %v488
        %v523 = vmul.f32 %v494, %v489
        %v524 = vmul.f32 %v494, %v490
        %v525 = vmul.f32 %v494, %v491
        %v526 = vmul.f32 %v494, %v492
        %v527 = vadd.f32 %v268, %v495
        %v528 = vadd.f32 %v269, %v496
        %v529 = vadd.f32 %v270, %v497
        %v530 = vadd.f32 %v271, %v498
        %v531 = vadd.f32 %v272, %v499
        %v532 = vadd.f32 %v273, %v500
        %v533 = vadd.f32 %v274, %v501
        %v534 = vadd.f32 %v275, %v502
        %v535 = vadd.f32 %v276, %v503
        %v536 = vadd.f32 %v277, %v504
        %v537 = vadd.f32 %v278, %v505
        %v538 = vadd.f32 %v279, %v506
        %v539 = vadd.f32 %v280, %v507
        %v540 = vadd.f32 %v281, %v508
        %v541 = vadd.f32 %v282, %v509
        %v542 = vadd.f32 %v283, %v510
        %v543 = vadd.f32 %v284, %v511
        %v544 = vadd.f32 %v285, %v512
        %v545 = vadd.f32 %v286, %v513
        %v546 = vadd.f32 %v287, %v514
        %v547 = vadd.f32 %v288, %v515
        %v548 = vadd.f32 %v289, %v516
        %v549 = vadd.f32 %v290, %v517
        %v550 = vadd.f32 %v291, %v518
        %v551 = vadd.f32 %v292, %v519
        %v552 = vadd.f32 %v293, %v520
        %v553 = vadd.f32 %v294, %v521
        %v554 = vadd.f32 %v295, %v522
        %v555 = vadd.f32 %v296, %v523
        %v556 = vadd.f32 %v297, %v524
        %v557 = vadd.f32 %v298, %v525
        %v558 = vadd.f32 %v299, %v526
        %559 = vmatprep.subr.mxu0 %v492
        %560 = vmatpush1.msra.mxu0 %v491
        %561 = vmatprep.subr.mxu0 %v490
        %562 = vmatpush1.msra.mxu0 %v489
        %563 = vmatprep.subr.mxu0 %v488
        %564 = vmatpush1.msra.mxu0 %v487
        %565 = vmatprep.subr.mxu0 %v486
        %566 = vmatpush1.msra.mxu0 %v485
        %567 = vmatprep.subr.mxu0 %v484
        %568 = vmatpush1.msra.mxu0 %v483
        %569 = vmatprep.subr.mxu0 %v482
        %570 = vmatpush1.msra.mxu0 %v481
        %571 = vmatprep.subr.mxu0 %v480
        %572 = vmatpush1.msra.mxu0 %v479
        %573 = vmatprep.subr.mxu0 %v478
        %574 = vmatpush1.msra.mxu0 %v477
        %575 = vmatprep.subr.mxu0 %v476
        %576 = vmatpush1.msra.mxu0 %v475
        %577 = vmatprep.subr.mxu0 %v474
        %578 = vmatpush1.msra.mxu0 %v473
        %579 = vmatprep.subr.mxu0 %v472
        %580 = vmatpush1.msra.mxu0 %v471
        %581 = vmatprep.subr.mxu0 %v470
        %582 = vmatpush1.msra.mxu0 %v469
        %583 = vmatprep.subr.mxu0 %v468
        %584 = vmatpush1.msra.mxu0 %v467
        %585 = vmatprep.subr.mxu0 %v466
        %586 = vmatpush1.msra.mxu0 %v465
        %587 = vmatprep.subr.mxu0 %v464
        %588 = vmatpush1.msra.mxu0 %v463
        %589 = vmatprep.subr.mxu0 %v462
        %590 = vmatpush1.msra.mxu0 %v461
        %591 = vmatprep.subr.mxu0 0.0
        %592 = vmatpush2.msra.mxu0 0.0
        %593 = vmatprep.subr.mxu0 0.0
        %594 = vmatpush2.msra.mxu0 0.0
        %595 = vmatprep.subr.mxu0 0.0
        %596 = vmatpush2.msra.mxu0 0.0
        %597 = vmatprep.subr.mxu0 0.0
        %598 = vmatpush2.msra.mxu0 0.0
        %599 = vmatprep.subr.mxu0 0.0
        %600 = vmatpush2.msra.mxu0 0.0
        %601 = vmatprep.subr.mxu0 0.0
        %602 = vmatpush2.msra.mxu0 0.0
        %603 = vmatprep.subr.mxu0 0.0
        %604 = vmatpush2.msra.mxu0 0.0
        %605 = vmatprep.subr.mxu0 0.0
        %606 = vmatpush2.msra.mxu0 0.0
        %607 = vmatprep.subr.mxu0 0.0
        %608 = vmatpush2.msra.mxu0 0.0
        %609 = vmatprep.subr.mxu0 0.0
        %610 = vmatpush2.msra.mxu0 0.0
        %611 = vmatprep.subr.mxu0 0.0
        %612 = vmatpush2.msra.mxu0 0.0
        %613 = vmatprep.subr.mxu0 0.0
        %614 = vmatpush2.msra.mxu0 0.0
        %615 = vmatprep.subr.mxu0 0.0
        %616 = vmatpush2.msra.mxu0 0.0
        %617 = vmatprep.subr.mxu0 0.0
        %618 = vmatpush2.msra.mxu0 0.0
        %619 = vmatprep.subr.mxu0 0.0
        %620 = vmatpush2.msra.mxu0 0.0
        %621 = vmatprep.subr.mxu0 0.0
        %622 = vmatpush2.msra.mxu0 0.0
        %623 = vmatprep.mubr.f32.mxu0 0.0
        %624 = vmatmul.mubr.f32.gmra.mxu0 %v218
        %v625 = vpop.f32.mrf.mxu0
        %v626 = vadd.f32 0.0, %v625
        %v627 = vpop.f32.mrf.mxu0
        %v628 = vadd.f32 0.0, %v627
        %629 = vmatprep.mubr.f32.mxu0 0.0
        %630 = vmatmul.mubr.f32.gmra.mxu0 %v219
        %v631 = vpop.f32.mrf.mxu0
        %v632 = vadd.f32 0.0, %v631
        %v633 = vpop.f32.mrf.mxu0
        %v634 = vadd.f32 0.0, %v633
        %635 = vmatprep.mubr.f32.mxu0 0.0
        %636 = vmatmul.mubr.f32.gmra.mxu0 %v220
        %v637 = vpop.f32.mrf.mxu0
        %v638 = vadd.f32 0.0, %v637
        %v639 = vpop.f32.mrf.mxu0
        %v640 = vadd.f32 0.0, %v639
        %641 = vmatprep.mubr.f32.mxu0 0.0
        %642 = vmatmul.mubr.f32.gmra.mxu0 %v221
        %v643 = vpop.f32.mrf.mxu0
        %v644 = vadd.f32 0.0, %v643
        %v645 = vpop.f32.mrf.mxu0
        %v646 = vadd.f32 0.0, %v645
        %647 = vmatprep.mubr.f32.mxu0 0.0
        %648 = vmatmul.mubr.f32.gmra.mxu0 %v222
        %v649 = vpop.f32.mrf.mxu0
        %v650 = vadd.f32 0.0, %v649
        %v651 = vpop.f32.mrf.mxu0
        %v652 = vadd.f32 0.0, %v651
        %653 = vmatprep.mubr.f32.mxu0 0.0
        %654 = vmatmul.mubr.f32.gmra.mxu0 %v223
        %v655 = vpop.f32.mrf.mxu0
        %v656 = vadd.f32 0.0, %v655
        %v657 = vpop.f32.mrf.mxu0
        %v658 = vadd.f32 0.0, %v657
        %659 = vmatprep.mubr.f32.mxu0 0.0
        %660 = vmatmul.mubr.f32.gmra.mxu0 %v224
        %v661 = vpop.f32.mrf.mxu0
        %v662 = vadd.f32 0.0, %v661
        %v663 = vpop.f32.mrf.mxu0
        %v664 = vadd.f32 0.0, %v663
        %665 = vmatprep.mubr.f32.mxu0 0.0
        %666 = vmatmul.mubr.f32.gmra.mxu0 %v225
        %v667 = vpop.f32.mrf.mxu0
        %v668 = vadd.f32 0.0, %v667
        %v669 = vpop.f32.mrf.mxu0
        %v670 = vadd.f32 0.0, %v669
        %671 = vmatprep.mubr.f32.mxu0 0.0
        %672 = vmatmul.mubr.f32.gmra.mxu0 %v226
        %v673 = vpop.f32.mrf.mxu0
        %v674 = vadd.f32 0.0, %v673
        %v675 = vpop.f32.mrf.mxu0
        %v676 = vadd.f32 0.0, %v675
        %677 = vmatprep.mubr.f32.mxu0 0.0
        %678 = vmatmul.mubr.f32.gmra.mxu0 %v227
        %v679 = vpop.f32.mrf.mxu0
        %v680 = vadd.f32 0.0, %v679
        %v681 = vpop.f32.mrf.mxu0
        %v682 = vadd.f32 0.0, %v681
        %683 = vmatprep.mubr.f32.mxu0 0.0
        %684 = vmatmul.mubr.f32.gmra.mxu0 %v228
        %v685 = vpop.f32.mrf.mxu0
        %v686 = vadd.f32 0.0, %v685
        %v687 = vpop.f32.mrf.mxu0
        %v688 = vadd.f32 0.0, %v687
        %689 = vmatprep.mubr.f32.mxu0 0.0
        %690 = vmatmul.mubr.f32.gmra.mxu0 %v229
        %v691 = vpop.f32.mrf.mxu0
        %v692 = vadd.f32 0.0, %v691
        %v693 = vpop.f32.mrf.mxu0
        %v694 = vadd.f32 0.0, %v693
        %695 = vmatprep.mubr.f32.mxu0 0.0
        %696 = vmatmul.mubr.f32.gmra.mxu0 %v230
        %v697 = vpop.f32.mrf.mxu0
        %v698 = vadd.f32 0.0, %v697
        %v699 = vpop.f32.mrf.mxu0
        %v700 = vadd.f32 0.0, %v699
        %701 = vmatprep.mubr.f32.mxu0 0.0
        %702 = vmatmul.mubr.f32.gmra.mxu0 %v231
        %v703 = vpop.f32.mrf.mxu0
        %v704 = vadd.f32 0.0, %v703
        %v705 = vpop.f32.mrf.mxu0
        %v706 = vadd.f32 0.0, %v705
        %707 = vmatprep.mubr.f32.mxu0 0.0
        %708 = vmatmul.mubr.f32.gmra.mxu0 %v232
        %v709 = vpop.f32.mrf.mxu0
        %v710 = vadd.f32 0.0, %v709
        %v711 = vpop.f32.mrf.mxu0
        %v712 = vadd.f32 0.0, %v711
        %713 = vmatprep.mubr.f32.mxu0 0.0
        %714 = vmatmul.mubr.f32.gmra.mxu0 %v233
        %v715 = vpop.f32.mrf.mxu0
        %v716 = vadd.f32 0.0, %v715
        %v717 = vpop.f32.mrf.mxu0
        %v718 = vadd.f32 0.0, %v717
        %719 = vdwg.mxu0
        %v720 = vmul.f32 %v626, 1.875
        %v721 = vmul.f32 %v628, 1.875
        %v722 = vmul.f32 %v632, 1.875
        %v723 = vmul.f32 %v634, 1.875
        %v724 = vmul.f32 %v638, 1.875
        %v725 = vmul.f32 %v640, 1.875
        %v726 = vmul.f32 %v644, 1.875
        %v727 = vmul.f32 %v646, 1.875
        %v728 = vmul.f32 %v650, 1.875
        %v729 = vmul.f32 %v652, 1.875
        %v730 = vmul.f32 %v656, 1.875
        %v731 = vmul.f32 %v658, 1.875
        %v732 = vmul.f32 %v662, 1.875
        %v733 = vmul.f32 %v664, 1.875
        %v734 = vmul.f32 %v668, 1.875
        %v735 = vmul.f32 %v670, 1.875
        %v736 = vmul.f32 %v674, 1.875
        %v737 = vmul.f32 %v676, 1.875
        %v738 = vmul.f32 %v680, 1.875
        %v739 = vmul.f32 %v682, 1.875
        %v740 = vmul.f32 %v686, 1.875
        %v741 = vmul.f32 %v688, 1.875
        %v742 = vmul.f32 %v692, 1.875
        %v743 = vmul.f32 %v694, 1.875
        %v744 = vmul.f32 %v698, 1.875
        %v745 = vmul.f32 %v700, 1.875
        %v746 = vmul.f32 %v704, 1.875
        %v747 = vmul.f32 %v706, 1.875
        %v748 = vmul.f32 %v710, 1.875
        %v749 = vmul.f32 %v712, 1.875
        %v750 = vmul.f32 %v716, 1.875
        %v751 = vmul.f32 %v718, 1.875
        %v752 = vmul.f32 %v234, 0.75
        %v753 = vmul.f32 %v235, 0.75
        %v754 = vmul.f32 %v236, 0.75
        %v755 = vmul.f32 %v237, 0.75
        %v756 = vmul.f32 %v238, 0.75
        %v757 = vmul.f32 %v239, 0.75
        %v758 = vmul.f32 %v240, 0.75
        %v759 = vmul.f32 %v241, 0.75
        %v760 = vmul.f32 %v242, 0.75
        %v761 = vmul.f32 %v243, 0.75
        %v762 = vmul.f32 %v244, 0.75
        %v763 = vmul.f32 %v245, 0.75
        %v764 = vmul.f32 %v246, 0.75
        %v765 = vmul.f32 %v247, 0.75
        %v766 = vmul.f32 %v248, 0.75
        %v767 = vmul.f32 %v249, 0.75
        %v768 = vmul.f32 %v250, 0.75
        %v769 = vmul.f32 %v251, 0.75
        %v770 = vmul.f32 %v252, 0.75
        %v771 = vmul.f32 %v253, 0.75
        %v772 = vmul.f32 %v254, 0.75
        %v773 = vmul.f32 %v255, 0.75
        %v774 = vmul.f32 %v256, 0.75
        %v775 = vmul.f32 %v257, 0.75
        %v776 = vmul.f32 %v258, 0.75
        %v777 = vmul.f32 %v259, 0.75
        %v778 = vmul.f32 %v260, 0.75
        %v779 = vmul.f32 %v261, 0.75
        %v780 = vmul.f32 %v262, 0.75
        %v781 = vmul.f32 %v263, 0.75
        %v782 = vmul.f32 %v264, 0.75
        %v783 = vmul.f32 %v265, 0.75
        %v784 = vsub.f32 %v720, %v752
        %v785 = vsub.f32 %v721, %v753
        %v786 = vsub.f32 %v722, %v754
        %v787 = vsub.f32 %v723, %v755
        %v788 = vsub.f32 %v724, %v756
        %v789 = vsub.f32 %v725, %v757
        %v790 = vsub.f32 %v726, %v758
        %v791 = vsub.f32 %v727, %v759
        %v792 = vsub.f32 %v728, %v760
        %v793 = vsub.f32 %v729, %v761
        %v794 = vsub.f32 %v730, %v762
        %v795 = vsub.f32 %v731, %v763
        %v796 = vsub.f32 %v732, %v764
        %v797 = vsub.f32 %v733, %v765
        %v798 = vsub.f32 %v734, %v766
        %v799 = vsub.f32 %v735, %v767
        %v800 = vsub.f32 %v736, %v768
        %v801 = vsub.f32 %v737, %v769
        %v802 = vsub.f32 %v738, %v770
        %v803 = vsub.f32 %v739, %v771
        %v804 = vsub.f32 %v740, %v772
        %v805 = vsub.f32 %v741, %v773
        %v806 = vsub.f32 %v742, %v774
        %v807 = vsub.f32 %v743, %v775
        %v808 = vsub.f32 %v744, %v776
        %v809 = vsub.f32 %v745, %v777
        %v810 = vsub.f32 %v746, %v778
        %v811 = vsub.f32 %v747, %v779
        %v812 = vsub.f32 %v748, %v780
        %v813 = vsub.f32 %v749, %v781
        %v814 = vsub.f32 %v750, %v782
        %v815 = vsub.f32 %v751, %v783
        %s816 = sld [smem:[#allocation2 + $0x2]]
        %v817 = vstv %s816
        %v818 = vmul.f32 %v817, %v784
        %v819 = vmul.f32 %v817, %v785
        %v820 = vmul.f32 %v817, %v786
        %v821 = vmul.f32 %v817, %v787
        %v822 = vmul.f32 %v817, %v788
        %v823 = vmul.f32 %v817, %v789
        %v824 = vmul.f32 %v817, %v790
        %v825 = vmul.f32 %v817, %v791
        %v826 = vmul.f32 %v817, %v792
        %v827 = vmul.f32 %v817, %v793
        %v828 = vmul.f32 %v817, %v794
        %v829 = vmul.f32 %v817, %v795
        %v830 = vmul.f32 %v817, %v796
        %v831 = vmul.f32 %v817, %v797
        %v832 = vmul.f32 %v817, %v798
        %v833 = vmul.f32 %v817, %v799
        %v834 = vmul.f32 %v817, %v800
        %v835 = vmul.f32 %v817, %v801
        %v836 = vmul.f32 %v817, %v802
        %v837 = vmul.f32 %v817, %v803
        %v838 = vmul.f32 %v817, %v804
        %v839 = vmul.f32 %v817, %v805
        %v840 = vmul.f32 %v817, %v806
        %v841 = vmul.f32 %v817, %v807
        %v842 = vmul.f32 %v817, %v808
        %v843 = vmul.f32 %v817, %v809
        %v844 = vmul.f32 %v817, %v810
        %v845 = vmul.f32 %v817, %v811
        %v846 = vmul.f32 %v817, %v812
        %v847 = vmul.f32 %v817, %v813
        %v848 = vmul.f32 %v817, %v814
        %v849 = vmul.f32 %v817, %v815
        %v850 = vadd.f32 %v527, %v818
        %v851 = vadd.f32 %v528, %v819
        %v852 = vadd.f32 %v529, %v820
        %v853 = vadd.f32 %v530, %v821
        %v854 = vadd.f32 %v531, %v822
        %v855 = vadd.f32 %v532, %v823
        %v856 = vadd.f32 %v533, %v824
        %v857 = vadd.f32 %v534, %v825
        %v858 = vadd.f32 %v535, %v826
        %v859 = vadd.f32 %v536, %v827
        %v860 = vadd.f32 %v537, %v828
        %v861 = vadd.f32 %v538, %v829
        %v862 = vadd.f32 %v539, %v830
        %v863 = vadd.f32 %v540, %v831
        %v864 = vadd.f32 %v541, %v832
        %v865 = vadd.f32 %v542, %v833
        %v866 = vadd.f32 %v543, %v834
        %v867 = vadd.f32 %v544, %v835
        %v868 = vadd.f32 %v545, %v836
        %v869 = vadd.f32 %v546, %v837
        %v870 = vadd.f32 %v547, %v838
        %v871 = vadd.f32 %v548, %v839
        %v872 = vadd.f32 %v549, %v840
        %v873 = vadd.f32 %v550, %v841
        %v874 = vadd.f32 %v551, %v842
        %v875 = vadd.f32 %v552, %v843
        %v876 = vadd.f32 %v553, %v844
        %v877 = vadd.f32 %v554, %v845
        %v878 = vadd.f32 %v555, %v846
        %v879 = vadd.f32 %v556, %v847
        %v880 = vadd.f32 %v557, %v848
        %v881 = vadd.f32 %v558, %v849
        %882 = vmatprep.subr.mxu0 %v815
        %883 = vmatpush1.msra.mxu0 %v814
        %884 = vmatprep.subr.mxu0 %v813
        %885 = vmatpush1.msra.mxu0 %v812
        %886 = vmatprep.subr.mxu0 %v811
        %887 = vmatpush1.msra.mxu0 %v810
        %888 = vmatprep.subr.mxu0 %v809
        %889 = vmatpush1.msra.mxu0 %v808
        %890 = vmatprep.subr.mxu0 %v807
        %891 = vmatpush1.msra.mxu0 %v806
        %892 = vmatprep.subr.mxu0 %v805
        %893 = vmatpush1.msra.mxu0 %v804
        %894 = vmatprep.subr.mxu0 %v803
        %895 = vmatpush1.msra.mxu0 %v802
        %896 = vmatprep.subr.mxu0 %v801
        %897 = vmatpush1.msra.mxu0 %v800
        %898 = vmatprep.subr.mxu0 %v799
        %899 = vmatpush1.msra.mxu0 %v798
        %900 = vmatprep.subr.mxu0 %v797
        %901 = vmatpush1.msra.mxu0 %v796
        %902 = vmatprep.subr.mxu0 %v795
        %903 = vmatpush1.msra.mxu0 %v794
        %904 = vmatprep.subr.mxu0 %v793
        %905 = vmatpush1.msra.mxu0 %v792
        %906 = vmatprep.subr.mxu0 %v791
        %907 = vmatpush1.msra.mxu0 %v790
        %908 = vmatprep.subr.mxu0 %v789
        %909 = vmatpush1.msra.mxu0 %v788
        %910 = vmatprep.subr.mxu0 %v787
        %911 = vmatpush1.msra.mxu0 %v786
        %912 = vmatprep.subr.mxu0 %v785
        %913 = vmatpush1.msra.mxu0 %v784
        %914 = vmatprep.subr.mxu0 0.0
        %915 = vmatpush2.msra.mxu0 0.0
        %916 = vmatprep.subr.mxu0 0.0
        %917 = vmatpush2.msra.mxu0 0.0
        %918 = vmatprep.subr.mxu0 0.0
        %919 = vmatpush2.msra.mxu0 0.0
        %920 = vmatprep.subr.mxu0 0.0
        %921 = vmatpush2.msra.mxu0 0.0
        %922 = vmatprep.subr.mxu0 0.0
        %923 = vmatpush2.msra.mxu0 0.0
        %924 = vmatprep.subr.mxu0 0.0
        %925 = vmatpush2.msra.mxu0 0.0
        %926 = vmatprep.subr.mxu0 0.0
        %927 = vmatpush2.msra.mxu0 0.0
        %928 = vmatprep.subr.mxu0 0.0
        %929 = vmatpush2.msra.mxu0 0.0
        %930 = vmatprep.subr.mxu0 0.0
        %931 = vmatpush2.msra.mxu0 0.0
        %932 = vmatprep.subr.mxu0 0.0
        %933 = vmatpush2.msra.mxu0 0.0
        %934 = vmatprep.subr.mxu0 0.0
        %935 = vmatpush2.msra.mxu0 0.0
        %936 = vmatprep.subr.mxu0 0.0
        %937 = vmatpush2.msra.mxu0 0.0
        %938 = vmatprep.subr.mxu0 0.0
        %939 = vmatpush2.msra.mxu0 0.0
        %940 = vmatprep.subr.mxu0 0.0
        %941 = vmatpush2.msra.mxu0 0.0
        %942 = vmatprep.subr.mxu0 0.0
        %943 = vmatpush2.msra.mxu0 0.0
        %944 = vmatprep.subr.mxu0 0.0
        %945 = vmatpush2.msra.mxu0 0.0
        %946 = vmatprep.mubr.f32.mxu0 0.0
        %947 = vmatmul.mubr.f32.gmra.mxu0 %v218
        %v948 = vpop.f32.mrf.mxu0
        %v949 = vadd.f32 0.0, %v948
        %v950 = vpop.f32.mrf.mxu0
        %v951 = vadd.f32 0.0, %v950
        %952 = vmatprep.mubr.f32.mxu0 0.0
        %953 = vmatmul.mubr.f32.gmra.mxu0 %v219
        %v954 = vpop.f32.mrf.mxu0
        %v955 = vadd.f32 0.0, %v954
        %v956 = vpop.f32.mrf.mxu0
        %v957 = vadd.f32 0.0, %v956
        %958 = vmatprep.mubr.f32.mxu0 0.0
        %959 = vmatmul.mubr.f32.gmra.mxu0 %v220
        %v960 = vpop.f32.mrf.mxu0
        %v961 = vadd.f32 0.0, %v960
        %v962 = vpop.f32.mrf.mxu0
        %v963 = vadd.f32 0.0, %v962
        %964 = vmatprep.mubr.f32.mxu0 0.0
        %965 = vmatmul.mubr.f32.gmra.mxu0 %v221
        %v966 = vpop.f32.mrf.mxu0
        %v967 = vadd.f32 0.0, %v966
        %v968 = vpop.f32.mrf.mxu0
        %v969 = vadd.f32 0.0, %v968
        %970 = vmatprep.mubr.f32.mxu0 0.0
        %971 = vmatmul.mubr.f32.gmra.mxu0 %v222
        %v972 = vpop.f32.mrf.mxu0
        %v973 = vadd.f32 0.0, %v972
        %v974 = vpop.f32.mrf.mxu0
        %v975 = vadd.f32 0.0, %v974
        %976 = vmatprep.mubr.f32.mxu0 0.0
        %977 = vmatmul.mubr.f32.gmra.mxu0 %v223
        %v978 = vpop.f32.mrf.mxu0
        %v979 = vadd.f32 0.0, %v978
        %v980 = vpop.f32.mrf.mxu0
        %v981 = vadd.f32 0.0, %v980
        %982 = vmatprep.mubr.f32.mxu0 0.0
        %983 = vmatmul.mubr.f32.gmra.mxu0 %v224
        %v984 = vpop.f32.mrf.mxu0
        %v985 = vadd.f32 0.0, %v984
        %v986 = vpop.f32.mrf.mxu0
        %v987 = vadd.f32 0.0, %v986
        %988 = vmatprep.mubr.f32.mxu0 0.0
        %989 = vmatmul.mubr.f32.gmra.mxu0 %v225
        %v990 = vpop.f32.mrf.mxu0
        %v991 = vadd.f32 0.0, %v990
        %v992 = vpop.f32.mrf.mxu0
        %v993 = vadd.f32 0.0, %v992
        %994 = vmatprep.mubr.f32.mxu0 0.0
        %995 = vmatmul.mubr.f32.gmra.mxu0 %v226
        %v996 = vpop.f32.mrf.mxu0
        %v997 = vadd.f32 0.0, %v996
        %v998 = vpop.f32.mrf.mxu0
        %v999 = vadd.f32 0.0, %v998
        %1000 = vmatprep.mubr.f32.mxu0 0.0
        %1001 = vmatmul.mubr.f32.gmra.mxu0 %v227
        %v1002 = vpop.f32.mrf.mxu0
        %v1003 = vadd.f32 0.0, %v1002
        %v1004 = vpop.f32.mrf.mxu0
        %v1005 = vadd.f32 0.0, %v1004
        %1006 = vmatprep.mubr.f32.mxu0 0.0
        %1007 = vmatmul.mubr.f32.gmra.mxu0 %v228
        %v1008 = vpop.f32.mrf.mxu0
        %v1009 = vadd.f32 0.0, %v1008
        %v1010 = vpop.f32.mrf.mxu0
        %v1011 = vadd.f32 0.0, %v1010
        %1012 = vmatprep.mubr.f32.mxu0 0.0
        %1013 = vmatmul.mubr.f32.gmra.mxu0 %v229
        %v1014 = vpop.f32.mrf.mxu0
        %v1015 = vadd.f32 0.0, %v1014
        %v1016 = vpop.f32.mrf.mxu0
        %v1017 = vadd.f32 0.0, %v1016
        %1018 = vmatprep.mubr.f32.mxu0 0.0
        %1019 = vmatmul.mubr.f32.gmra.mxu0 %v230
        %v1020 = vpop.f32.mrf.mxu0
        %v1021 = vadd.f32 0.0, %v1020
        %v1022 = vpop.f32.mrf.mxu0
        %v1023 = vadd.f32 0.0, %v1022
        %1024 = vmatprep.mubr.f32.mxu0 0.0
        %1025 = vmatmul.mubr.f32.gmra.mxu0 %v231
        %v1026 = vpop.f32.mrf.mxu0
        %v1027 = vadd.f32 0.0, %v1026
        %v1028 = vpop.f32.mrf.mxu0
        %v1029 = vadd.f32 0.0, %v1028
        %1030 = vmatprep.mubr.f32.mxu0 0.0
        %1031 = vmatmul.mubr.f32.gmra.mxu0 %v232
        %v1032 = vpop.f32.mrf.mxu0
        %v1033 = vadd.f32 0.0, %v1032
        %v1034 = vpop.f32.mrf.mxu0
        %v1035 = vadd.f32 0.0, %v1034
        %1036 = vmatprep.mubr.f32.mxu0 0.0
        %1037 = vmatmul.mubr.f32.gmra.mxu0 %v233
        %v1038 = vpop.f32.mrf.mxu0
        %v1039 = vadd.f32 0.0, %v1038
        %v1040 = vpop.f32.mrf.mxu0
        %v1041 = vadd.f32 0.0, %v1040
        %1042 = vdwg.mxu0
        %v1043 = vmul.f32 %v949, 1.8666667
        %v1044 = vmul.f32 %v951, 1.8666667
        %v1045 = vmul.f32 %v955, 1.8666667
        %v1046 = vmul.f32 %v957, 1.8666667
        %v1047 = vmul.f32 %v961, 1.8666667
        %v1048 = vmul.f32 %v963, 1.8666667
        %v1049 = vmul.f32 %v967, 1.8666667
        %v1050 = vmul.f32 %v969, 1.8666667
        %v1051 = vmul.f32 %v973, 1.8666667
        %v1052 = vmul.f32 %v975, 1.8666667
        %v1053 = vmul.f32 %v979, 1.8666667
        %v1054 = vmul.f32 %v981, 1.8666667
        %v1055 = vmul.f32 %v985, 1.8666667
        %v1056 = vmul.f32 %v987, 1.8666667
        %v1057 = vmul.f32 %v991, 1.8666667
        %v1058 = vmul.f32 %v993, 1.8666667
        %v1059 = vmul.f32 %v997, 1.8666667
        %v1060 = vmul.f32 %v999, 1.8666667
        %v1061 = vmul.f32 %v1003, 1.8666667
        %v1062 = vmul.f32 %v1005, 1.8666667
        %v1063 = vmul.f32 %v1009, 1.8666667
        %v1064 = vmul.f32 %v1011, 1.8666667
        %v1065 = vmul.f32 %v1015, 1.8666667
        %v1066 = vmul.f32 %v1017, 1.8666667
        %v1067 = vmul.f32 %v1021, 1.8666667
        %v1068 = vmul.f32 %v1023, 1.8666667
        %v1069 = vmul.f32 %v1027, 1.8666667
        %v1070 = vmul.f32 %v1029, 1.8666667
        %v1071 = vmul.f32 %v1033, 1.8666667
        %v1072 = vmul.f32 %v1035, 1.8666667
        %v1073 = vmul.f32 %v1039, 1.8666667
        %v1074 = vmul.f32 %v1041, 1.8666667
        %v1075 = vmul.f32 %v461, 0.8
        %v1076 = vmul.f32 %v462, 0.8
        %v1077 = vmul.f32 %v463, 0.8
        %v1078 = vmul.f32 %v464, 0.8
        %v1079 = vmul.f32 %v465, 0.8
        %v1080 = vmul.f32 %v466, 0.8
        %v1081 = vmul.f32 %v467, 0.8
        %v1082 = vmul.f32 %v468, 0.8
        %v1083 = vmul.f32 %v469, 0.8
        %v1084 = vmul.f32 %v470, 0.8
        %v1085 = vmul.f32 %v471, 0.8
        %v1086 = vmul.f32 %v472, 0.8
        %v1087 = vmul.f32 %v473, 0.8
        %v1088 = vmul.f32 %v474, 0.8
        %v1089 = vmul.f32 %v475, 0.8
        %v1090 = vmul.f32 %v476, 0.8
        %v1091 = vmul.f32 %v477, 0.8
        %v1092 = vmul.f32 %v478, 0.8
        %v1093 = vmul.f32 %v479, 0.8
        %v1094 = vmul.f32 %v480, 0.8
        %v1095 = vmul.f32 %v481, 0.8
        %v1096 = vmul.f32 %v482, 0.8
        %v1097 = vmul.f32 %v483, 0.8
        %v1098 = vmul.f32 %v484, 0.8
        %v1099 = vmul.f32 %v485, 0.8
        %v1100 = vmul.f32 %v486, 0.8
        %v1101 = vmul.f32 %v487, 0.8
        %v1102 = vmul.f32 %v488, 0.8
        %v1103 = vmul.f32 %v489, 0.8
        %v1104 = vmul.f32 %v490, 0.8
        %v1105 = vmul.f32 %v491, 0.8
        %v1106 = vmul.f32 %v492, 0.8
        %v1107 = vsub.f32 %v1043, %v1075
        %v1108 = vsub.f32 %v1044, %v1076
        %v1109 = vsub.f32 %v1045, %v1077
        %v1110 = vsub.f32 %v1046, %v1078
        %v1111 = vsub.f32 %v1047, %v1079
        %v1112 = vsub.f32 %v1048, %v1080
        %v1113 = vsub.f32 %v1049, %v1081
        %v1114 = vsub.f32 %v1050, %v1082
        %v1115 = vsub.f32 %v1051, %v1083
        %v1116 = vsub.f32 %v1052, %v1084
        %v1117 = vsub.f32 %v1053, %v1085
        %v1118 = vsub.f32 %v1054, %v1086
        %v1119 = vsub.f32 %v1055, %v1087
        %v1120 = vsub.f32 %v1056, %v1088
        %v1121 = vsub.f32 %v1057, %v1089
        %v1122 = vsub.f32 %v1058, %v1090
        %v1123 = vsub.f32 %v1059, %v1091
        %v1124 = vsub.f32 %v1060, %v1092
        %v1125 = vsub.f32 %v1061, %v1093
        %v1126 = vsub.f32 %v1062, %v1094
        %v1127 = vsub.f32 %v1063, %v1095
        %v1128 = vsub.f32 %v1064, %v1096
        %v1129 = vsub.f32 %v1065, %v1097
        %v1130 = vsub.f32 %v1066, %v1098
        %v1131 = vsub.f32 %v1067, %v1099
        %v1132 = vsub.f32 %v1068, %v1100
        %v1133 = vsub.f32 %v1069, %v1101
        %v1134 = vsub.f32 %v1070, %v1102
        %v1135 = vsub.f32 %v1071, %v1103
        %v1136 = vsub.f32 %v1072, %v1104
        %v1137 = vsub.f32 %v1073, %v1105
        %v1138 = vsub.f32 %v1074, %v1106
        %s1139 = sld [smem:[#allocation2 + $0x3]]
        %v1140 = vstv %s1139
        %v1141 = vmul.f32 %v1140, %v1107
        %v1142 = vmul.f32 %v1140, %v1108
        %v1143 = vmul.f32 %v1140, %v1109
        %v1144 = vmul.f32 %v1140, %v1110
        %v1145 = vmul.f32 %v1140, %v1111
        %v1146 = vmul.f32 %v1140, %v1112
        %v1147 = vmul.f32 %v1140, %v1113
        %v1148 = vmul.f32 %v1140, %v1114
        %v1149 = vmul.f32 %v1140, %v1115
        %v1150 = vmul.f32 %v1140, %v1116
        %v1151 = vmul.f32 %v1140, %v1117
        %v1152 = vmul.f32 %v1140, %v1118
        %v1153 = vmul.f32 %v1140, %v1119
        %v1154 = vmul.f32 %v1140, %v1120
        %v1155 = vmul.f32 %v1140, %v1121
        %v1156 = vmul.f32 %v1140, %v1122
        %v1157 = vmul.f32 %v1140, %v1123
        %v1158 = vmul.f32 %v1140, %v1124
        %v1159 = vmul.f32 %v1140, %v1125
        %v1160 = vmul.f32 %v1140, %v1126
        %v1161 = vmul.f32 %v1140, %v1127
        %v1162 = vmul.f32 %v1140, %v1128
        %v1163 = vmul.f32 %v1140, %v1129
        %v1164 = vmul.f32 %v1140, %v1130
        %v1165 = vmul.f32 %v1140, %v1131
        %v1166 = vmul.f32 %v1140, %v1132
        %v1167 = vmul.f32 %v1140, %v1133
        %v1168 = vmul.f32 %v1140, %v1134
        %v1169 = vmul.f32 %v1140, %v1135
        %v1170 = vmul.f32 %v1140, %v1136
        %v1171 = vmul.f32 %v1140, %v1137
        %v1172 = vmul.f32 %v1140, %v1138
        %v1173 = vadd.f32 %v850, %v1141
        %v1174 = vadd.f32 %v851, %v1142
        %v1175 = vadd.f32 %v852, %v1143
        %v1176 = vadd.f32 %v853, %v1144
        %v1177 = vadd.f32 %v854, %v1145
        %v1178 = vadd.f32 %v855, %v1146
        %v1179 = vadd.f32 %v856, %v1147
        %v1180 = vadd.f32 %v857, %v1148
        %v1181 = vadd.f32 %v858, %v1149
        %v1182 = vadd.f32 %v859, %v1150
        %v1183 = vadd.f32 %v860, %v1151
        %v1184 = vadd.f32 %v861, %v1152
        %v1185 = vadd.f32 %v862, %v1153
        %v1186 = vadd.f32 %v863, %v1154
        %v1187 = vadd.f32 %v864, %v1155
        %v1188 = vadd.f32 %v865, %v1156
        %v1189 = vadd.f32 %v866, %v1157
        %v1190 = vadd.f32 %v867, %v1158
        %v1191 = vadd.f32 %v868, %v1159
        %v1192 = vadd.f32 %v869, %v1160
        %v1193 = vadd.f32 %v870, %v1161
        %v1194 = vadd.f32 %v871, %v1162
        %v1195 = vadd.f32 %v872, %v1163
        %v1196 = vadd.f32 %v873, %v1164
        %v1197 = vadd.f32 %v874, %v1165
        %v1198 = vadd.f32 %v875, %v1166
        %v1199 = vadd.f32 %v876, %v1167
        %v1200 = vadd.f32 %v877, %v1168
        %v1201 = vadd.f32 %v878, %v1169
        %v1202 = vadd.f32 %v879, %v1170
        %v1203 = vadd.f32 %v880, %v1171
        %v1204 = vadd.f32 %v881, %v1172
        %1205 = vst [vmem:[%s215] sm:$0xff] %v1173
        %1206 = vst [vmem:[%s215 + $0x8] sm:$0xff] %v1174
        %1207 = vst [vmem:[%s215 + $0x10] sm:$0xff] %v1175
        %1208 = vst [vmem:[%s215 + $0x18] sm:$0xff] %v1176
        %1209 = vst [vmem:[%s215 + $0x20] sm:$0xff] %v1177
        %1210 = vst [vmem:[%s215 + $0x28] sm:$0xff] %v1178
        %1211 = vst [vmem:[%s215 + $0x30] sm:$0xff] %v1179
        %1212 = vst [vmem:[%s215 + $0x38] sm:$0xff] %v1180
        %1213 = vst [vmem:[%s215 + $0x40] sm:$0xff] %v1181
        %1214 = vst [vmem:[%s215 + $0x48] sm:$0xff] %v1182
        %1215 = vst [vmem:[%s215 + $0x50] sm:$0xff] %v1183
        %1216 = vst [vmem:[%s215 + $0x58] sm:$0xff] %v1184
        %1217 = vst [vmem:[%s215 + $0x60] sm:$0xff] %v1185
        %1218 = vst [vmem:[%s215 + $0x68] sm:$0xff] %v1186
        %1219 = vst [vmem:[%s215 + $0x70] sm:$0xff] %v1187
        %1220 = vst [vmem:[%s215 + $0x78] sm:$0xff] %v1188
        %1221 = vst [vmem:[%s215 + $0x80] sm:$0xff] %v1189
        %1222 = vst [vmem:[%s215 + $0x88] sm:$0xff] %v1190
        %1223 = vst [vmem:[%s215 + $0x90] sm:$0xff] %v1191
        %1224 = vst [vmem:[%s215 + $0x98] sm:$0xff] %v1192
        %1225 = vst [vmem:[%s215 + $0xa0] sm:$0xff] %v1193
        %1226 = vst [vmem:[%s215 + $0xa8] sm:$0xff] %v1194
        %1227 = vst [vmem:[%s215 + $0xb0] sm:$0xff] %v1195
        %1228 = vst [vmem:[%s215 + $0xb8] sm:$0xff] %v1196
        %1229 = vst [vmem:[%s215 + $0xc0] sm:$0xff] %v1197
        %1230 = vst [vmem:[%s215 + $0xc8] sm:$0xff] %v1198
        %1231 = vst [vmem:[%s215 + $0xd0] sm:$0xff] %v1199
        %1232 = vst [vmem:[%s215 + $0xd8] sm:$0xff] %v1200
        %1233 = vst [vmem:[%s215 + $0xe0] sm:$0xff] %v1201
        %1234 = vst [vmem:[%s215 + $0xe8] sm:$0xff] %v1202
        %1235 = vst [vmem:[%s215 + $0xf0] sm:$0xff] %v1203
        %1236 = vst [vmem:[%s215 + $0xf8] sm:$0xff] %v1204
        %s1237 = sand.u32 %s98, 1
        %s1238 = scalar_lea.sflag [#allocation4], %s1237
        %s1239 = sand.u32 %s98, 1
        %s1240 = smul.addr %s1239, 256
        %s1241 = scalar_lea.vmem [#allocation9], %s1240
        // Predicated region
        $region45: #{tpu_custom_call.1} parent=31 // pred_check
          %p1242 = pneg %p108
        $region46: #{tpu_custom_call.1} parent=31 // pred_check_branch
          %1244 = sbr.rel (%p1242) target = $region48
        $region47: #{tpu_custom_call.1} parent=31 // pred_region
          %s1245 = smul.u32 2, %s22
          %s1247 = ssub.s32 4096, 4096
          %1248 = vsyncadd %s1238, %s1247
          %s1249 = smul.addr %s1245, 128
          %s1250 = scalar_lea.hbm %s3, %s1249
          %s1251 = sshll.u32 %s1241, 4
          %s1252 = int_to_ptr.vmem [resolvable:$true] %s1251
          %1257 = dma.vmem_to_hbm [thread:$0]  %s1252, 4096, %s1250, %s1238, 256, 512, 16
        $region48: #{tpu_custom_call.1} parent=31 // pred_fallthru
          _
      $region32: #{tpu_custom_call.1} parent=5 // pred_fallthru
        _
      %p1258 = scmp.le.s32.totalorder 2, %s17
      // Predicated region
      $region49: #{tpu_custom_call.1} parent=5 // pred_check
        %p1259 = pneg %p1258
      $region50: #{tpu_custom_call.1} parent=5 // pred_check_branch
        %1261 = sbr.rel (%p1259) target = $region52
      $region51: #{tpu_custom_call.1} parent=5 // pred_region
        %s1262 = ssub.s32 %s17, 2
        // Predicated region
        $region53: #{tpu_custom_call.1} parent=51 // pred_check
          %p1263 = pneg %p114
        $region54: #{tpu_custom_call.1} parent=51 // pred_check_branch
          %1265 = sbr.rel (%p1263) target = $region56
        $region55: #{tpu_custom_call.1} parent=51 // pred_region
          %s1266 = sand.u32 %s99, 1
          %s1267 = scalar_lea.sflag [#allocation4], %s1266
          %s1268 = sand.u32 %s99, 1
          %s1269 = smul.addr %s1268, 256
          %s1270 = scalar_lea.vmem [#allocation9], %s1269
          %1271 = dma.done %s1267, 4096
        $region56: #{tpu_custom_call.1} parent=51 // pred_fallthru
          _
      $region52: #{tpu_custom_call.1} parent=5 // pred_fallthru
        _
    $region6: #{tpu_custom_call.1} parent=1 // loop_footer
      %s21 = sadd.s32 1, %s17
    $region7: #{tpu_custom_call.1} parent=1 // loop_footer_branch
      %16 = sbr.rel target = $region3
    $region8: #{tpu_custom_call.1} parent=1 // loop_exit
      _
    %1272 = vsyncpa [#allocation3], 1
    %s1273 = scalar_lea.sflag [#allocation3], 1
    %1274 = vsyncpa %s1273, 1
    %1275 = vsyncpa [#allocation8], 1
    %s1276 = scalar_lea.sflag [#allocation8], 1
    %1277 = vsyncpa %s1276, 1
    %1278 = vsyncpa [#allocation4], 1
    %s1279 = scalar_lea.sflag [#allocation4], 1
    %1280 = vsyncpa %s1279, 1
    %1281 = vsyncpa [#allocation5], 1
    %s1282 = scalar_lea.sflag [#allocation5], 1
    %1283 = vsyncpa %s1282, 1

</llo_original>
